<compile_context>
chip_gen: v7x
topology: tpu7x:2x2x1
jax: 0.10.0
libtpu: 0.0.40
codegen_flags: <defaults>
</compile_context>

<pallas_src>
import jax
import jax.numpy as jnp
from jax.experimental import pallas as pl
from jax.experimental.pallas import tpu as pltpu

IN_FEATURES = 512
OUT_FEATURES = 512


def linear_kernel(x_ref, w_ref, b_ref, o_ref):
    # x_ref: [TM, 512] f32, w_ref: [512, TN] bf16, b_ref: [1, TN] f32.
    # Cast x to bf16 on the VPU (hidden under the MXU) -> native-rate matmul
    # with f32 accumulation; bias add stays f32.
    x_bf16 = x_ref[...].astype(jnp.bfloat16)
    acc = jnp.dot(x_bf16, w_ref[...], preferred_element_type=jnp.float32)
    o_ref[...] = (acc + b_ref[...]).astype(o_ref.dtype)


def stage1_forward(x, w_t, b, *, tm=512):
    """y = x @ w_t + b with a batch-tiled Pallas kernel.

    x:   [B, 512]   float32
    w_t: [512, 512] transposed PyTorch weight (W.T), ideally already bf16
    b:   [512]      float32
    Returns [B, 512] float32.
    """
    B, K = x.shape
    assert K == IN_FEATURES
    if w_t.dtype != jnp.bfloat16:  # stored bf16 at init; guard for f32 callers
        w_t = w_t.astype(jnp.bfloat16)
    b2d = b.reshape(1, OUT_FEATURES).astype(jnp.float32)

    # Batch tile: multiple of 8 (sublane), capped at `tm`. No host-side padding
    # or output slicing; Pallas clips ragged boundary blocks.
    tm_eff = min(tm, max(8, -(-B // 8) * 8))
    nb = pl.cdiv(B, tm_eff)
    # Single batch block -> split N into two 256-wide parallel blocks (v7x 2 TCs).
    nn = 2 if nb == 1 else 1
    tn = OUT_FEATURES // nn

    cost = pl.CostEstimate(
        flops=2 * B * IN_FEATURES * OUT_FEATURES,
        transcendentals=0,
        bytes_accessed=(
            B * IN_FEATURES * 4                # x (f32), read once
            + IN_FEATURES * OUT_FEATURES * 2   # W (bf16), fetched once / resident
            + OUT_FEATURES * 4                 # bias
            + B * OUT_FEATURES * 4             # y (f32)
        ),
    )

    # TODO(synk): if downstream accepts bf16 activations, emit the output in
    # bf16 to halve the writeback stream (largest remaining HBM cost).
    return pl.pallas_call(
        linear_kernel,
        out_shape=jax.ShapeDtypeStruct((B, OUT_FEATURES), jnp.float32),
        grid=(nn, nb),  # grid axes: (output-column split j, batch block i)
        in_specs=[
            pl.BlockSpec((tm_eff, IN_FEATURES), lambda j, i: (i, 0)),
            # Constant block index along the batch axis -> weight stays
            # resident in VMEM across all batch steps.
            pl.BlockSpec((IN_FEATURES, tn), lambda j, i: (0, j)),
            pl.BlockSpec((1, tn), lambda j, i: (0, j)),
        ],
        out_specs=pl.BlockSpec((tm_eff, tn), lambda j, i: (i, j)),
        compiler_params=pltpu.CompilerParams(
            dimension_semantics=("parallel", "parallel"),
        ),
        cost_estimate=cost,
    )(x, w_t, b2d)


def init_params(key):
    """nn.Linear default init (uniform in ±1/sqrt(fan_in)); weight stored
    transposed and in bf16 once so no per-call cast is needed."""
    kw, kb = jax.random.split(key)
    bound = 1.0 / jnp.sqrt(jnp.float32(IN_FEATURES))
    # PyTorch weight is [out, in]; store its transpose [in, out].
    w = jax.random.uniform(
        kw, (OUT_FEATURES, IN_FEATURES), jnp.float32, -bound, bound
    )
    b = jax.random.uniform(kb, (OUT_FEATURES,), jnp.float32, -bound, bound)
    return w.T.astype(jnp.bfloat16), b


if __name__ == "__main__":
    key = jax.random.PRNGKey(0)
    kx, kp = jax.random.split(key)
    w_t, b = init_params(kp)

    def reference(xx):
        # Same bf16 input/weight rounding with f32 accumulation as the kernel.
        return jnp.dot(xx.astype(jnp.bfloat16), w_t,
                       preferred_element_type=jnp.float32) + b

    # Small batch: single batch block -> output columns split across two
    # parallel blocks (both TensorCores on v7x).
    B = 8
    x = jax.random.normal(kx, (B, IN_FEATURES), jnp.float32)
    y = stage1_forward(x, w_t, b)
    jax.block_until_ready(y)
    assert y.shape == (B, OUT_FEATURES)
    assert y.dtype == jnp.float32
    assert jnp.allclose(y, reference(x), atol=5e-3, rtol=5e-3)

    # Ragged batch (not a multiple of 8): boundary block handled by Pallas
    # clipping — no host-side pad/slice anywhere.
    x12 = jax.random.normal(jax.random.PRNGKey(1), (12, IN_FEATURES), jnp.float32)
    y12 = stage1_forward(x12, w_t, b)
    jax.block_until_ready(y12)
    assert y12.shape == (12, OUT_FEATURES)
    assert jnp.allclose(y12, reference(x12), atol=5e-3, rtol=5e-3)

    # Multi-block batch path (weight resident across batch grid steps).
    x24 = jax.random.normal(jax.random.PRNGKey(2), (24, IN_FEATURES), jnp.float32)
    y24 = stage1_forward(x24, w_t, b, tm=8)
    jax.block_until_ready(y24)
    assert jnp.allclose(y24, reference(x24), atol=5e-3, rtol=5e-3)

    print("KERNEL_OK")
</pallas_src>

<mosaic_0001>
module attributes {stable_mosaic.version = 11 : i64} {
  func.func @linear_kernel(%arg0: i32, %arg1: i32, %arg2: memref<8x512xf32, #tpu.memory_space<vmem>>, %arg3: memref<512x256xbf16, #tpu.memory_space<vmem>>, %arg4: memref<1x256xf32, #tpu.memory_space<vmem>>, %arg5: memref<8x256xf32, #tpu.memory_space<vmem>>) attributes {dimension_semantics = [#tpu.dimension_semantics<parallel>, #tpu.dimension_semantics<parallel>], iteration_bounds = array<i64: 2, 1>, scalar_prefetch = 0 : i64, scratch_operands = 0 : i64, tpu.core_type = #tpu.core_type<tc>, window_params = [{transform_indices = @transform_0, window_bounds = array<i64: 8, 512>}, {transform_indices = @transform_1, window_bounds = array<i64: 512, 256>}, {transform_indices = @transform_2, window_bounds = array<i64: 1, 256>}, {transform_indices = @transform_3, window_bounds = array<i64: 8, 256>}]} {
    %c0 = arith.constant 0 : index
    %c0_0 = arith.constant 0 : index
    %0 = vector.load %arg2[%c0, %c0_0] : memref<8x512xf32, #tpu.memory_space<vmem>>, vector<8x512xf32>
    %1 = arith.truncf %0 : vector<8x512xf32> to vector<8x512xbf16>
    %c0_1 = arith.constant 0 : index
    %c0_2 = arith.constant 0 : index
    %2 = vector.load %arg3[%c0_1, %c0_2] : memref<512x256xbf16, #tpu.memory_space<vmem>>, vector<512x256xbf16>
    %cst = arith.constant dense<0.000000e+00> : vector<8x256xf32>
    %3 = tpu.matmul %1, %2, %cst {dimension_numbers = #tpu.dot_dimension_numbers<[1], [0], [0], [1], [0, 0, 1, 1], [], []>} : vector<8x512xbf16>, vector<512x256xbf16>, vector<8x256xf32> -> vector<8x256xf32>
    %c0_3 = arith.constant 0 : index
    %c0_4 = arith.constant 0 : index
    %4 = vector.load %arg4[%c0_3, %c0_4] : memref<1x256xf32, #tpu.memory_space<vmem>>, vector<1x256xf32>
    %5 = vector.broadcast %4 : vector<1x256xf32> to vector<8x256xf32>
    %6 = arith.addf %3, %5 : vector<8x256xf32>
    %c0_5 = arith.constant 0 : index
    %c0_6 = arith.constant 0 : index
    %7 = vector.load %arg5[%c0_5, %c0_6] : memref<8x256xf32, #tpu.memory_space<vmem>>, vector<8x256xf32>
    tpu.vector_store %arg5[%c0_5, %c0_6], %6 {strides = array<i32>} : memref<8x256xf32, #tpu.memory_space<vmem>>, vector<8x256xf32>,
    return
  }
  func.func @transform_0(%arg0: i32, %arg1: i32) -> (i32, i32) {
    %c0_i32 = arith.constant 0 : i32
    %c0_i32_0 = arith.constant 0 : i32
    return %arg1, %c0_i32 : i32, i32
  }
  func.func @transform_1(%arg0: i32, %arg1: i32) -> (i32, i32) {
    %c0_i32 = arith.constant 0 : i32
    %c0_i32_0 = arith.constant 0 : i32
    return %c0_i32, %arg0 : i32, i32
  }
  func.func @transform_2(%arg0: i32, %arg1: i32) -> (i32, i32) {
    %c0_i32 = arith.constant 0 : i32
    %c0_i32_0 = arith.constant 0 : i32
    return %c0_i32, %arg0 : i32, i32
  }
  func.func @transform_3(%arg0: i32, %arg1: i32) -> (i32, i32) {
    %c0_i32 = arith.constant 0 : i32
    return %arg1, %arg0 : i32, i32
  }
}

</mosaic_0001>

<llo_original>
// kernel: tpu_custom_call.1
$region0: #{tpu_custom_call.1}
  #allocation0 [shape = 'u32[]', space=smem, size = 0x4, offset = 0x4, fixed_abs, tag = 'smem constant byte address 0x4 - core index']
  #allocation1 [shape = 'u32[144,128]{1,0:T(1,128)}', space=vmem, size = 0x12000, scoped, tag = 'internal scratch']
  %s0 = inlined_call_operand.hbm [shape: f32[8,512], index: 0, kind: input, shape index: {}]
  %s1 = inlined_call_operand.hbm [shape: bf16[512,512], index: 1, kind: input, shape index: {}]
  %s2 = inlined_call_operand.vmem [shape: f32[1,512], index: 2, kind: input, shape index: {}]
  %s3 = inlined_call_operand.hbm [shape: f32[8,512], index: 3, kind: output, shape index: {}]
  %s4 = sld [smem:[#allocation0]]
  $region53: #{tpu_custom_call.1} parent=0
    _
  %s6 = ssub.s32 1, %s4
  %s7 = scalar_select 0, %s6, %s4
  $region1: #{tpu_custom_call.1} parent=0
    #allocation2 [shape = 'u8[16384]{0}', space=vmem, size = 0x4000, scoped, tag = 'input window, operand 0, single buffered']
    #allocation3 [shape = 's32[2]{0}', space=sflag, size = 0x8, scoped, tag = 'scoped memory for tpu_custom_call.1']
    #allocation4 [shape = 's32[2]{0}', space=sflag, size = 0x8, scoped, tag = 'scoped memory for tpu_custom_call.1']
    #allocation5 [shape = 'u8[524288]{0}', space=vmem, size = 0x80000, scoped, tag = 'input window, operand 1']
    #allocation6 [shape = 's32[2]{0}', space=sflag, size = 0x8, scoped, tag = 'scoped memory for tpu_custom_call.1']
    #allocation7 [shape = 'u8[16384]{0}', space=vmem, size = 0x4000, scoped, tag = 'output window, operand 0']
    %8 = vsyncpa [#allocation3], 0
    %9 = vsyncpa [#allocation6], 0
    %s10 = scalar_lea.sflag [#allocation6], 1
    %11 = vsyncpa %s10, 0
    %12 = vsyncpa [#allocation4], 0
    %s13 = scalar_lea.sflag [#allocation4], 1
    %14 = vsyncpa %s13, 0
    loop: start=0, step=1, limit=4
    $region2: #{tpu_custom_call.1} parent=1 // loop_pre_header
      _
    $region3: #{tpu_custom_call.1} parent=1 // loop_header
      %s16 = sphi 0, %s20
      %p17 = scmp.ge.s32.totalorder %s16, 4
      %s23 = sphi 0, %s35
      %s24 = sphi 0, %s31
      %s25 = sphi 0, %s23
      %s26 = sphi 0, %s24
      %s27 = sphi 0, %s25
      %s28 = sphi 0, %s26
      %s38 = sphi 0, %s40
      %s41 = sphi 0, %s38
      %s42 = sphi 0, %s41
      %s58 = sphi 0, %s42
      %s64 = sphi 0, %s66
      %s67 = sphi 0, %s64
      %s68 = sphi 0, %s67
      %s84 = sphi 0, %s68
      %s90 = sphi 0, %s92
      %s93 = sphi 0, %s90
      %s94 = sphi 0, %s93
      %s110 = sphi 0, %s94
      %s118 = sphi 0, %s120
      %s121 = sphi 0, %s118
      %s122 = sphi 0, %s121
      %s138 = sphi 0, %s122
    $region4: #{tpu_custom_call.1} parent=1 // loop_header_branch
      %19 = sbr.rel (%p17) target = $region8
    $region5: #{tpu_custom_call.1} parent=1 // loop_body
      %s21 = ssub.s32 %s16, 1
      %s22 = ssub.s32 %s16, 2
      %s29 = sadd.s32 1, %s24
      %p30 = scmp.ge.s32.totalorder %s29, 1
      %s31 = scalar_select %p30, 0, %s29
      %s32 = sadd.s32 1, %s23
      %s33 = scalar_select %p30, %s32, %s23
      %p34 = scmp.ge.s32.totalorder %s33, 2
      %s35 = scalar_select %p34, 0, %s33
      %s36 = ssub.s32 %s24, %s31
      %p37 = scmp.eq.s32.totalorder %s36, 0
      %s39 = sadd.s32 %s38, 1
      %s40 = scalar_select %p37, %s38, %s39
      %p43 = pneg %p37
      %p44 = scmp.eq.s32.totalorder %s16, 1
      %p45 = por %p43, %p44
      %p46 = scmp.ne.s32.totalorder %s38, %s41
      %p47 = scmp.eq.s32.totalorder %s16, 0
      %p48 = por %p46, %p47
      %p49 = scmp.ne.s32.totalorder %s38, %s41
      %p50 = scmp.eq.s32.totalorder %s21, 1
      %p51 = por %p49, %p50
      %p52 = scmp.ne.s32.totalorder %s41, %s42
      %p53 = scmp.eq.s32.totalorder %s21, 0
      %p54 = por %p52, %p53
      %p55 = scmp.ne.s32.totalorder %s41, %s42
      %p56 = scmp.eq.s32.totalorder %s22, 1
      %p57 = por %p55, %p56
      %p59 = scmp.ne.s32.totalorder %s42, %s58
      %p60 = scmp.eq.s32.totalorder %s22, 0
      %p61 = por %p59, %p60
      %s62 = ssub.s32 %s23, %s35
      %p63 = scmp.eq.s32.totalorder %s62, 0
      %s65 = sadd.s32 %s64, 1
      %s66 = scalar_select %p63, %s64, %s65
      %p69 = pneg %p63
      %p70 = scmp.eq.s32.totalorder %s16, 1
      %p71 = por %p69, %p70
      %p72 = scmp.ne.s32.totalorder %s64, %s67
      %p73 = scmp.eq.s32.totalorder %s16, 0
      %p74 = por %p72, %p73
      %p75 = scmp.ne.s32.totalorder %s64, %s67
      %p76 = scmp.eq.s32.totalorder %s21, 1
      %p77 = por %p75, %p76
      %p78 = scmp.ne.s32.totalorder %s67, %s68
      %p79 = scmp.eq.s32.totalorder %s21, 0
      %p80 = por %p78, %p79
      %p81 = scmp.ne.s32.totalorder %s67, %s68
      %p82 = scmp.eq.s32.totalorder %s22, 1
      %p83 = por %p81, %p82
      %p85 = scmp.ne.s32.totalorder %s68, %s84
      %p86 = scmp.eq.s32.totalorder %s22, 0
      %p87 = por %p85, %p86
      %s88 = ssub.s32 %s23, %s35
      %p89 = scmp.eq.s32.totalorder %s88, 0
      %s91 = sadd.s32 %s90, 1
      %s92 = scalar_select %p89, %s90, %s91
      %p95 = pneg %p89
      %p96 = scmp.eq.s32.totalorder %s16, 1
      %p97 = por %p95, %p96
      %p98 = scmp.ne.s32.totalorder %s90, %s93
      %p99 = scmp.eq.s32.totalorder %s16, 0
      %p100 = por %p98, %p99
      %p101 = scmp.ne.s32.totalorder %s90, %s93
      %p102 = scmp.eq.s32.totalorder %s21, 1
      %p103 = por %p101, %p102
      %p104 = scmp.ne.s32.totalorder %s93, %s94
      %p105 = scmp.eq.s32.totalorder %s21, 0
      %p106 = por %p104, %p105
      %p107 = scmp.ne.s32.totalorder %s93, %s94
      %p108 = scmp.eq.s32.totalorder %s22, 1
      %p109 = por %p107, %p108
      %p111 = scmp.ne.s32.totalorder %s94, %s110
      %p112 = scmp.eq.s32.totalorder %s22, 0
      %p113 = por %p111, %p112
      %s114 = ssub.s32 %s24, %s31
      %s115 = ssub.s32 %s23, %s35
      %s116 = sor.u32 %s114, %s115
      %p117 = scmp.eq.s32.totalorder %s116, 0
      %s119 = sadd.s32 %s118, 1
      %s120 = scalar_select %p117, %s118, %s119
      %p123 = pneg %p117
      %p124 = scmp.eq.s32.totalorder %s16, 1
      %p125 = por %p123, %p124
      %p126 = scmp.ne.s32.totalorder %s118, %s121
      %p127 = scmp.eq.s32.totalorder %s16, 0
      %p128 = por %p126, %p127
      %p129 = scmp.ne.s32.totalorder %s118, %s121
      %p130 = scmp.eq.s32.totalorder %s21, 1
      %p131 = por %p129, %p130
      %p132 = scmp.ne.s32.totalorder %s121, %s122
      %p133 = scmp.eq.s32.totalorder %s21, 0
      %p134 = por %p132, %p133
      %p135 = scmp.ne.s32.totalorder %s121, %s122
      %p136 = scmp.eq.s32.totalorder %s22, 1
      %p137 = por %p135, %p136
      %p139 = scmp.ne.s32.totalorder %s122, %s138
      %p140 = scmp.eq.s32.totalorder %s22, 0
      %p141 = por %p139, %p140
      %p142 = scmp.le.s32.totalorder 1, %s16
      %p143 = scmp.lt.s32.totalorder %s16, 3
      %p144 = pnand %p142, %p143
      %p145 = pneg %p144
      // Predicated region
      $region9: #{tpu_custom_call.1} parent=5 // pred_check
        _
      $region10: #{tpu_custom_call.1} parent=5 // pred_check_branch
        %147 = sbr.rel (%p144) target = $region12
      $region11: #{tpu_custom_call.1} parent=5 // pred_region
        %s148 = ssub.s32 %s16, 1
        // Predicated region
        $region13: #{tpu_custom_call.1} parent=11 // pred_check
          %p149 = pneg %p54
        $region14: #{tpu_custom_call.1} parent=11 // pred_check_branch
          %151 = sbr.rel (%p149) target = $region16
        $region15: #{tpu_custom_call.1} parent=11 // pred_region
          %s153 = ssub.s32 512, 512
          %154 = vsyncadd [#allocation3], %s153
          %s155 = smul.addr %s26, 4
          %s156 = smul.addr %s155, 128
          %s157 = scalar_lea.hbm %s0, %s156
          %s159 = sshll.u32 [#allocation2], 4
          %s160 = int_to_ptr.vmem [resolvable:$true] %s159
          %162 = dma.hbm_to_vmem [thread:$0]  %s157, 512, %s160, [#allocation3]
        $region16: #{tpu_custom_call.1} parent=11 // pred_fallthru
          _
      $region12: #{tpu_custom_call.1} parent=5 // pred_fallthru
        _
      %p163 = scmp.lt.s32.totalorder %s16, 2
      // Predicated region
      $region17: #{tpu_custom_call.1} parent=5 // pred_check
        %p164 = pneg %p163
      $region18: #{tpu_custom_call.1} parent=5 // pred_check_branch
        %166 = sbr.rel (%p164) target = $region20
      $region19: #{tpu_custom_call.1} parent=5 // pred_region
        // Predicated region
        $region21: #{tpu_custom_call.1} parent=19 // pred_check
          %p167 = pneg %p74
        $region22: #{tpu_custom_call.1} parent=19 // pred_check_branch
          %169 = sbr.rel (%p167) target = $region24
        $region23: #{tpu_custom_call.1} parent=19 // pred_region
          %s170 = sand.u32 %s64, 1
          %s171 = scalar_lea.sflag [#allocation6], %s170
          %s172 = sand.u32 %s64, 1
          %s173 = smul.addr %s172, 512
          %s174 = scalar_lea.vmem [#allocation5], %s173
          %s175 = smul.u32 2, %s23
          %s177 = ssub.s32 8192, 8192
          %178 = vsyncadd %s171, %s177
          %s179 = smul.addr %s175, 64
          %s180 = scalar_lea.hbm %s1, %s179
          %s181 = sshll.u32 %s174, 4
          %s182 = int_to_ptr.vmem [resolvable:$true] %s181
          %187 = dma.hbm_to_vmem [thread:$0]  %s180, 8192, %s182, %s171, 256, 128, 8
        $region24: #{tpu_custom_call.1} parent=19 // pred_fallthru
          _
        // Predicated region
        $region25: #{tpu_custom_call.1} parent=19 // pred_check
          %p188 = pneg %p100
        $region26: #{tpu_custom_call.1} parent=19 // pred_check_branch
          %190 = sbr.rel (%p188) target = $region28
        $region27: #{tpu_custom_call.1} parent=19 // pred_region
          %s191 = smul.u32 2, %s23
          %p192 = scmp.lt.s32.totalorder %s191, 3
          %s193 = scalar_select %p192, %s191, 3
          %s194 = scalar_lea.vmem %s2, %s193
          %s195 = smul.u32 2, %s23
        $region28: #{tpu_custom_call.1} parent=19 // pred_fallthru
          _
      $region20: #{tpu_custom_call.1} parent=5 // pred_fallthru
        _
      %p196 = scmp.le.s32.totalorder 1, %s16
      %p197 = scmp.lt.s32.totalorder %s16, 3
      %p198 = pnand %p196, %p197
      %p199 = pneg %p198
      // Predicated region
      $region29: #{tpu_custom_call.1} parent=5 // pred_check
        _
      $region30: #{tpu_custom_call.1} parent=5 // pred_check_branch
        %201 = sbr.rel (%p198) target = $region32
      $region31: #{tpu_custom_call.1} parent=5 // pred_region
        %s202 = ssub.s32 %s16, 1
        // Predicated region
        $region33: #{tpu_custom_call.1} parent=31 // pred_check
          %p203 = pneg %p54
        $region34: #{tpu_custom_call.1} parent=31 // pred_check_branch
          %205 = sbr.rel (%p203) target = $region36
        $region35: #{tpu_custom_call.1} parent=31 // pred_region
          %206 = dma.done [#allocation3], 512
        $region36: #{tpu_custom_call.1} parent=31 // pred_fallthru
          _
        %s207 = sand.u32 %s67, 1
        %s208 = scalar_lea.sflag [#allocation6], %s207
        %s209 = sand.u32 %s67, 1
        %s210 = smul.addr %s209, 512
        %s211 = scalar_lea.vmem [#allocation5], %s210
        // Predicated region
        $region37: #{tpu_custom_call.1} parent=31 // pred_check
          %p212 = pneg %p80
        $region38: #{tpu_custom_call.1} parent=31 // pred_check_branch
          %214 = sbr.rel (%p212) target = $region40
        $region39: #{tpu_custom_call.1} parent=31 // pred_region
          %215 = dma.done %s208, 8192
        $region40: #{tpu_custom_call.1} parent=31 // pred_fallthru
          _
        %p216 = pneg %p54
        %p217 = pneg %p51
        %s218 = sand.u32 %s67, 1
        %s219 = scalar_lea.sflag [#allocation6], %s218
        %s220 = sand.u32 %s67, 1
        %s221 = smul.addr %s220, 512
        %s222 = scalar_lea.vmem [#allocation5], %s221
        %p223 = pneg %p80
        %p224 = pneg %p77
        %s225 = smul.u32 2, %s25
        %p226 = scmp.lt.s32.totalorder %s225, 3
        %s227 = scalar_select %p226, %s225, 3
        %s228 = scalar_lea.vmem %s2, %s227
        %p229 = pneg %p106
        %p230 = pneg %p103
        %p231 = pneg %p134
        %p232 = pneg %p131
        %s233 = sand.u32 %s121, 1
        %s234 = scalar_lea.sflag [#allocation4], %s233
        %s235 = sand.u32 %s121, 1
        %s236 = smul.addr %s235, 16
        %s237 = scalar_lea.vmem [#allocation7], %s236
        %s238 = smul.u32 2, %s25
        %s239 = smul.u32 2, %s25
        %p240 = scmp.lt.s32.totalorder %s239, 3
        %s241 = scalar_select %p240, %s239, 3
        %s242 = scalar_lea.vmem %s2, %s241
        %s243 = smul.u32 2, %s25
        %s244 = smul.u32 2, %s25
        %v245 = vld [vmem:[#allocation2] sm:$0xff]
        %v246 = vld [vmem:[#allocation2 + $0x8] sm:$0xff]
        %v247 = vld [vmem:[#allocation2 + $0x10] sm:$0xff]
        %v248 = vld [vmem:[#allocation2 + $0x18] sm:$0xff]
        %v249 = vpack.c.bf16 %v245, %v245
        %v250 = vpack.c.bf16 %v246, %v246
        %v251 = vpack.c.bf16 %v247, %v247
        %v252 = vpack.c.bf16 %v248, %v248
        %v253 = vld [vmem:[%s211] sm:$0xff]
        %v254 = vld [vmem:[%s211 + $0x8] sm:$0xff]
        %v255 = vld [vmem:[%s211 + $0x10] sm:$0xff]
        %v256 = vld [vmem:[%s211 + $0x18] sm:$0xff]
        %v257 = vld [vmem:[%s211 + $0x20] sm:$0xff]
        %v258 = vld [vmem:[%s211 + $0x28] sm:$0xff]
        %v259 = vld [vmem:[%s211 + $0x30] sm:$0xff]
        %v260 = vld [vmem:[%s211 + $0x38] sm:$0xff]
        %v261 = vld [vmem:[%s211 + $0x40] sm:$0xff]
        %v262 = vld [vmem:[%s211 + $0x48] sm:$0xff]
        %v263 = vld [vmem:[%s211 + $0x50] sm:$0xff]
        %v264 = vld [vmem:[%s211 + $0x58] sm:$0xff]
        %v265 = vld [vmem:[%s211 + $0x60] sm:$0xff]
        %v266 = vld [vmem:[%s211 + $0x68] sm:$0xff]
        %v267 = vld [vmem:[%s211 + $0x70] sm:$0xff]
        %v268 = vld [vmem:[%s211 + $0x78] sm:$0xff]
        %v269 = vld [vmem:[%s211 + $0x80] sm:$0xff]
        %v270 = vld [vmem:[%s211 + $0x88] sm:$0xff]
        %v271 = vld [vmem:[%s211 + $0x90] sm:$0xff]
        %v272 = vld [vmem:[%s211 + $0x98] sm:$0xff]
        %v273 = vld [vmem:[%s211 + $0xa0] sm:$0xff]
        %v274 = vld [vmem:[%s211 + $0xa8] sm:$0xff]
        %v275 = vld [vmem:[%s211 + $0xb0] sm:$0xff]
        %v276 = vld [vmem:[%s211 + $0xb8] sm:$0xff]
        %v277 = vld [vmem:[%s211 + $0xc0] sm:$0xff]
        %v278 = vld [vmem:[%s211 + $0xc8] sm:$0xff]
        %v279 = vld [vmem:[%s211 + $0xd0] sm:$0xff]
        %v280 = vld [vmem:[%s211 + $0xd8] sm:$0xff]
        %v281 = vld [vmem:[%s211 + $0xe0] sm:$0xff]
        %v282 = vld [vmem:[%s211 + $0xe8] sm:$0xff]
        %v283 = vld [vmem:[%s211 + $0xf0] sm:$0xff]
        %v284 = vld [vmem:[%s211 + $0xf8] sm:$0xff]
        %v285 = vld [vmem:[%s211 + $0x100] sm:$0xff]
        %v286 = vld [vmem:[%s211 + $0x108] sm:$0xff]
        %v287 = vld [vmem:[%s211 + $0x110] sm:$0xff]
        %v288 = vld [vmem:[%s211 + $0x118] sm:$0xff]
        %v289 = vld [vmem:[%s211 + $0x120] sm:$0xff]
        %v290 = vld [vmem:[%s211 + $0x128] sm:$0xff]
        %v291 = vld [vmem:[%s211 + $0x130] sm:$0xff]
        %v292 = vld [vmem:[%s211 + $0x138] sm:$0xff]
        %v293 = vld [vmem:[%s211 + $0x140] sm:$0xff]
        %v294 = vld [vmem:[%s211 + $0x148] sm:$0xff]
        %v295 = vld [vmem:[%s211 + $0x150] sm:$0xff]
        %v296 = vld [vmem:[%s211 + $0x158] sm:$0xff]
        %v297 = vld [vmem:[%s211 + $0x160] sm:$0xff]
        %v298 = vld [vmem:[%s211 + $0x168] sm:$0xff]
        %v299 = vld [vmem:[%s211 + $0x170] sm:$0xff]
        %v300 = vld [vmem:[%s211 + $0x178] sm:$0xff]
        %v301 = vld [vmem:[%s211 + $0x180] sm:$0xff]
        %v302 = vld [vmem:[%s211 + $0x188] sm:$0xff]
        %v303 = vld [vmem:[%s211 + $0x190] sm:$0xff]
        %v304 = vld [vmem:[%s211 + $0x198] sm:$0xff]
        %v305 = vld [vmem:[%s211 + $0x1a0] sm:$0xff]
        %v306 = vld [vmem:[%s211 + $0x1a8] sm:$0xff]
        %v307 = vld [vmem:[%s211 + $0x1b0] sm:$0xff]
        %v308 = vld [vmem:[%s211 + $0x1b8] sm:$0xff]
        %v309 = vld [vmem:[%s211 + $0x1c0] sm:$0xff]
        %v310 = vld [vmem:[%s211 + $0x1c8] sm:$0xff]
        %v311 = vld [vmem:[%s211 + $0x1d0] sm:$0xff]
        %v312 = vld [vmem:[%s211 + $0x1d8] sm:$0xff]
        %v313 = vld [vmem:[%s211 + $0x1e0] sm:$0xff]
        %v314 = vld [vmem:[%s211 + $0x1e8] sm:$0xff]
        %v315 = vld [vmem:[%s211 + $0x1f0] sm:$0xff]
        %v316 = vld [vmem:[%s211 + $0x1f8] sm:$0xff]
        %v317 = vld [vmem:[%s242] sm:$0x3]
        %v319 = vlaneseq
        %v320 = vshrl.u32 %v319, 7
        %v321 = vsub.s32 0, %v320
        %v322 = vrot.slane %v317, %v321
        %v323 = vlaneseq
        %v324 = vshrl.u32 %v323, 7
        %v325 = vsub.s32 1, %v324
        %v326 = vrot.slane %v317, %v325
        %v393 = vunpack.c.l.b16 %v253
        %v394 = vunpack.c.h.b16 %v253
        %v395 = vunpack.c.l.b16 %v254
        %v396 = vunpack.c.h.b16 %v254
        %v397 = vunpack.c.l.b16 %v255
        %v398 = vunpack.c.h.b16 %v255
        %v399 = vunpack.c.l.b16 %v256
        %v400 = vunpack.c.h.b16 %v256
        %v401 = vunpack.c.l.b16 %v257
        %v402 = vunpack.c.h.b16 %v257
        %v403 = vunpack.c.l.b16 %v258
        %v404 = vunpack.c.h.b16 %v258
        %v405 = vunpack.c.l.b16 %v259
        %v406 = vunpack.c.h.b16 %v259
        %v407 = vunpack.c.l.b16 %v260
        %v408 = vunpack.c.h.b16 %v260
        %v409 = vunpack.c.l.b16 %v261
        %v410 = vunpack.c.h.b16 %v261
        %v411 = vunpack.c.l.b16 %v262
        %v412 = vunpack.c.h.b16 %v262
        %v413 = vunpack.c.l.b16 %v263
        %v414 = vunpack.c.h.b16 %v263
        %v415 = vunpack.c.l.b16 %v264
        %v416 = vunpack.c.h.b16 %v264
        %v417 = vunpack.c.l.b16 %v265
        %v418 = vunpack.c.h.b16 %v265
        %v419 = vunpack.c.l.b16 %v266
        %v420 = vunpack.c.h.b16 %v266
        %v421 = vunpack.c.l.b16 %v267
        %v422 = vunpack.c.h.b16 %v267
        %v423 = vunpack.c.l.b16 %v268
        %v424 = vunpack.c.h.b16 %v268
        %v425 = vunpack.c.l.b16 %v269
        %v426 = vunpack.c.h.b16 %v269
        %v427 = vunpack.c.l.b16 %v270
        %v428 = vunpack.c.h.b16 %v270
        %v429 = vunpack.c.l.b16 %v271
        %v430 = vunpack.c.h.b16 %v271
        %v431 = vunpack.c.l.b16 %v272
        %v432 = vunpack.c.h.b16 %v272
        %v433 = vunpack.c.l.b16 %v273
        %v434 = vunpack.c.h.b16 %v273
        %v435 = vunpack.c.l.b16 %v274
        %v436 = vunpack.c.h.b16 %v274
        %v437 = vunpack.c.l.b16 %v275
        %v438 = vunpack.c.h.b16 %v275
        %v439 = vunpack.c.l.b16 %v276
        %v440 = vunpack.c.h.b16 %v276
        %v441 = vunpack.c.l.b16 %v277
        %v442 = vunpack.c.h.b16 %v277
        %v443 = vunpack.c.l.b16 %v278
        %v444 = vunpack.c.h.b16 %v278
        %v445 = vunpack.c.l.b16 %v279
        %v446 = vunpack.c.h.b16 %v279
        %v447 = vunpack.c.l.b16 %v280
        %v448 = vunpack.c.h.b16 %v280
        %v449 = vunpack.c.l.b16 %v281
        %v450 = vunpack.c.h.b16 %v281
        %v451 = vunpack.c.l.b16 %v282
        %v452 = vunpack.c.h.b16 %v282
        %v453 = vunpack.c.l.b16 %v283
        %v454 = vunpack.c.h.b16 %v283
        %v455 = vunpack.c.l.b16 %v284
        %v456 = vunpack.c.h.b16 %v284
        %v457 = vunpack.c.l.b16 %v285
        %v458 = vunpack.c.h.b16 %v285
        %v459 = vunpack.c.l.b16 %v286
        %v460 = vunpack.c.h.b16 %v286
        %v461 = vunpack.c.l.b16 %v287
        %v462 = vunpack.c.h.b16 %v287
        %v463 = vunpack.c.l.b16 %v288
        %v464 = vunpack.c.h.b16 %v288
        %v465 = vunpack.c.l.b16 %v289
        %v466 = vunpack.c.h.b16 %v289
        %v467 = vunpack.c.l.b16 %v290
        %v468 = vunpack.c.h.b16 %v290
        %v469 = vunpack.c.l.b16 %v291
        %v470 = vunpack.c.h.b16 %v291
        %v471 = vunpack.c.l.b16 %v292
        %v472 = vunpack.c.h.b16 %v292
        %v473 = vunpack.c.l.b16 %v293
        %v474 = vunpack.c.h.b16 %v293
        %v475 = vunpack.c.l.b16 %v294
        %v476 = vunpack.c.h.b16 %v294
        %v477 = vunpack.c.l.b16 %v295
        %v478 = vunpack.c.h.b16 %v295
        %v479 = vunpack.c.l.b16 %v296
        %v480 = vunpack.c.h.b16 %v296
        %v481 = vunpack.c.l.b16 %v297
        %v482 = vunpack.c.h.b16 %v297
        %v483 = vunpack.c.l.b16 %v298
        %v484 = vunpack.c.h.b16 %v298
        %v485 = vunpack.c.l.b16 %v299
        %v486 = vunpack.c.h.b16 %v299
        %v487 = vunpack.c.l.b16 %v300
        %v488 = vunpack.c.h.b16 %v300
        %v489 = vunpack.c.l.b16 %v301
        %v490 = vunpack.c.h.b16 %v301
        %v491 = vunpack.c.l.b16 %v302
        %v492 = vunpack.c.h.b16 %v302
        %v493 = vunpack.c.l.b16 %v303
        %v494 = vunpack.c.h.b16 %v303
        %v495 = vunpack.c.l.b16 %v304
        %v496 = vunpack.c.h.b16 %v304
        %v497 = vunpack.c.l.b16 %v305
        %v498 = vunpack.c.h.b16 %v305
        %v499 = vunpack.c.l.b16 %v306
        %v500 = vunpack.c.h.b16 %v306
        %v501 = vunpack.c.l.b16 %v307
        %v502 = vunpack.c.h.b16 %v307
        %v503 = vunpack.c.l.b16 %v308
        %v504 = vunpack.c.h.b16 %v308
        %v505 = vunpack.c.l.b16 %v309
        %v506 = vunpack.c.h.b16 %v309
        %v507 = vunpack.c.l.b16 %v310
        %v508 = vunpack.c.h.b16 %v310
        %v509 = vunpack.c.l.b16 %v311
        %v510 = vunpack.c.h.b16 %v311
        %v511 = vunpack.c.l.b16 %v312
        %v512 = vunpack.c.h.b16 %v312
        %v513 = vunpack.c.l.b16 %v313
        %v514 = vunpack.c.h.b16 %v313
        %v515 = vunpack.c.l.b16 %v314
        %v516 = vunpack.c.h.b16 %v314
        %v517 = vunpack.c.l.b16 %v315
        %v518 = vunpack.c.h.b16 %v315
        %v519 = vunpack.c.l.b16 %v316
        %v520 = vunpack.c.h.b16 %v316
        %v521 = vpack.c.b16 %v395, %v393
        %v522 = vpack.c.b16 %v396, %v394
        %v523 = vpack.c.b16 %v399, %v397
        %v524 = vpack.c.b16 %v400, %v398
        %v525 = vpack.c.b16 %v403, %v401
        %v526 = vpack.c.b16 %v404, %v402
        %v527 = vpack.c.b16 %v407, %v405
        %v528 = vpack.c.b16 %v408, %v406
        %v529 = vpack.c.b16 %v411, %v409
        %v530 = vpack.c.b16 %v412, %v410
        %v531 = vpack.c.b16 %v415, %v413
        %v532 = vpack.c.b16 %v416, %v414
        %v533 = vpack.c.b16 %v419, %v417
        %v534 = vpack.c.b16 %v420, %v418
        %v535 = vpack.c.b16 %v423, %v421
        %v536 = vpack.c.b16 %v424, %v422
        %v537 = vpack.c.b16 %v427, %v425
        %v538 = vpack.c.b16 %v428, %v426
        %v539 = vpack.c.b16 %v431, %v429
        %v540 = vpack.c.b16 %v432, %v430
        %v541 = vpack.c.b16 %v435, %v433
        %v542 = vpack.c.b16 %v436, %v434
        %v543 = vpack.c.b16 %v439, %v437
        %v544 = vpack.c.b16 %v440, %v438
        %v545 = vpack.c.b16 %v443, %v441
        %v546 = vpack.c.b16 %v444, %v442
        %v547 = vpack.c.b16 %v447, %v445
        %v548 = vpack.c.b16 %v448, %v446
        %v549 = vpack.c.b16 %v451, %v449
        %v550 = vpack.c.b16 %v452, %v450
        %v551 = vpack.c.b16 %v455, %v453
        %v552 = vpack.c.b16 %v456, %v454
        %v553 = vpack.c.b16 %v459, %v457
        %v554 = vpack.c.b16 %v460, %v458
        %v555 = vpack.c.b16 %v463, %v461
        %v556 = vpack.c.b16 %v464, %v462
        %v557 = vpack.c.b16 %v467, %v465
        %v558 = vpack.c.b16 %v468, %v466
        %v559 = vpack.c.b16 %v471, %v469
        %v560 = vpack.c.b16 %v472, %v470
        %v561 = vpack.c.b16 %v475, %v473
        %v562 = vpack.c.b16 %v476, %v474
        %v563 = vpack.c.b16 %v479, %v477
        %v564 = vpack.c.b16 %v480, %v478
        %v565 = vpack.c.b16 %v483, %v481
        %v566 = vpack.c.b16 %v484, %v482
        %v567 = vpack.c.b16 %v487, %v485
        %v568 = vpack.c.b16 %v488, %v486
        %v569 = vpack.c.b16 %v491, %v489
        %v570 = vpack.c.b16 %v492, %v490
        %v571 = vpack.c.b16 %v495, %v493
        %v572 = vpack.c.b16 %v496, %v494
        %v573 = vpack.c.b16 %v499, %v497
        %v574 = vpack.c.b16 %v500, %v498
        %v575 = vpack.c.b16 %v503, %v501
        %v576 = vpack.c.b16 %v504, %v502
        %v577 = vpack.c.b16 %v507, %v505
        %v578 = vpack.c.b16 %v508, %v506
        %v579 = vpack.c.b16 %v511, %v509
        %v580 = vpack.c.b16 %v512, %v510
        %v581 = vpack.c.b16 %v515, %v513
        %v582 = vpack.c.b16 %v516, %v514
        %v583 = vpack.c.b16 %v519, %v517
        %v584 = vpack.c.b16 %v520, %v518
        %649 = vmatprep.subr.bf16.mxu0 %v522
        %650 = vmatpush1.bf16.msra.mxu0 %v521
        %651 = vmatprep.subr.bf16.mxu0 %v524
        %652 = vmatpush1.bf16.msra.mxu0 %v523
        %653 = vmatprep.subr.bf16.mxu0 %v526
        %654 = vmatpush1.bf16.msra.mxu0 %v525
        %655 = vmatprep.subr.bf16.mxu0 %v528
        %656 = vmatpush1.bf16.msra.mxu0 %v527
        %657 = vmatprep.subr.bf16.mxu0 %v530
        %658 = vmatpush1.bf16.msra.mxu0 %v529
        %659 = vmatprep.subr.bf16.mxu0 %v532
        %660 = vmatpush1.bf16.msra.mxu0 %v531
        %661 = vmatprep.subr.bf16.mxu0 %v534
        %662 = vmatpush1.bf16.msra.mxu0 %v533
        %663 = vmatprep.subr.bf16.mxu0 %v536
        %664 = vmatpush1.bf16.msra.mxu0 %v535
        %665 = vmatprep.subr.bf16.mxu0 %v538
        %666 = vmatpush1.bf16.msra.mxu0 %v537
        %667 = vmatprep.subr.bf16.mxu0 %v540
        %668 = vmatpush1.bf16.msra.mxu0 %v539
        %669 = vmatprep.subr.bf16.mxu0 %v542
        %670 = vmatpush1.bf16.msra.mxu0 %v541
        %671 = vmatprep.subr.bf16.mxu0 %v544
        %672 = vmatpush1.bf16.msra.mxu0 %v543
        %673 = vmatprep.subr.bf16.mxu0 %v546
        %674 = vmatpush1.bf16.msra.mxu0 %v545
        %675 = vmatprep.subr.bf16.mxu0 %v548
        %676 = vmatpush1.bf16.msra.mxu0 %v547
        %677 = vmatprep.subr.bf16.mxu0 %v550
        %678 = vmatpush1.bf16.msra.mxu0 %v549
        %679 = vmatprep.subr.bf16.mxu0 %v552
        %680 = vmatpush1.bf16.msra.mxu0 %v551
        %681 = vmatprep.mubr.bf16.mxu0 %v250
        %682 = vmatmul.mubr.bf16.gmra.mrb[0].mxu0 %v249
        %v683 = vpop.f32.mrb[0].mxu0
        %v684 = vadd.f32 %v322, %v683
        %v685 = vpop.f32.mrb[0].mxu0
        %v686 = vadd.f32 %v326, %v685
        %v687 = vpop.f32.mrb[0].mxu0
        %v688 = vpop.f32.mrb[0].mxu0
        %689 = vdwg.mxu0
        %690 = vmatprep.subr.bf16.mxu0 %v554
        %691 = vmatpush1.bf16.msra.mxu0 %v553
        %692 = vmatprep.subr.bf16.mxu0 %v556
        %693 = vmatpush1.bf16.msra.mxu0 %v555
        %694 = vmatprep.subr.bf16.mxu0 %v558
        %695 = vmatpush1.bf16.msra.mxu0 %v557
        %696 = vmatprep.subr.bf16.mxu0 %v560
        %697 = vmatpush1.bf16.msra.mxu0 %v559
        %698 = vmatprep.subr.bf16.mxu0 %v562
        %699 = vmatpush1.bf16.msra.mxu0 %v561
        %700 = vmatprep.subr.bf16.mxu0 %v564
        %701 = vmatpush1.bf16.msra.mxu0 %v563
        %702 = vmatprep.subr.bf16.mxu0 %v566
        %703 = vmatpush1.bf16.msra.mxu0 %v565
        %704 = vmatprep.subr.bf16.mxu0 %v568
        %705 = vmatpush1.bf16.msra.mxu0 %v567
        %706 = vmatprep.subr.bf16.mxu0 %v570
        %707 = vmatpush1.bf16.msra.mxu0 %v569
        %708 = vmatprep.subr.bf16.mxu0 %v572
        %709 = vmatpush1.bf16.msra.mxu0 %v571
        %710 = vmatprep.subr.bf16.mxu0 %v574
        %711 = vmatpush1.bf16.msra.mxu0 %v573
        %712 = vmatprep.subr.bf16.mxu0 %v576
        %713 = vmatpush1.bf16.msra.mxu0 %v575
        %714 = vmatprep.subr.bf16.mxu0 %v578
        %715 = vmatpush1.bf16.msra.mxu0 %v577
        %716 = vmatprep.subr.bf16.mxu0 %v580
        %717 = vmatpush1.bf16.msra.mxu0 %v579
        %718 = vmatprep.subr.bf16.mxu0 %v582
        %719 = vmatpush1.bf16.msra.mxu0 %v581
        %720 = vmatprep.subr.bf16.mxu0 %v584
        %721 = vmatpush1.bf16.msra.mxu0 %v583
        %722 = vmatprep.mubr.bf16.mxu0 %v252
        %723 = vmatmul.mubr.bf16.gmra.mrb[0].mxu0 %v251
        %v724 = vpop.f32.mrb[0].mxu0
        %v725 = vadd.f32 %v684, %v724
        %v726 = vpop.f32.mrb[0].mxu0
        %v727 = vadd.f32 %v686, %v726
        %v728 = vpop.f32.mrb[0].mxu0
        %v729 = vpop.f32.mrb[0].mxu0
        %730 = vdwg.mxu0
        %731 = vst [vmem:[%s237] sm:$0xff] %v725
        %732 = vst [vmem:[%s237 + $0x8] sm:$0xff] %v727
        %s733 = sand.u32 %s121, 1
        %s734 = scalar_lea.sflag [#allocation4], %s733
        %s735 = sand.u32 %s121, 1
        %s736 = smul.addr %s735, 16
        %s737 = scalar_lea.vmem [#allocation7], %s736
        // Predicated region
        $region41: #{tpu_custom_call.1} parent=31 // pred_check
          %p738 = pneg %p131
        $region42: #{tpu_custom_call.1} parent=31 // pred_check_branch
          %740 = sbr.rel (%p738) target = $region44
        $region43: #{tpu_custom_call.1} parent=31 // pred_region
          %s741 = smul.u32 2, %s25
          %s743 = ssub.s32 256, 256
          %744 = vsyncadd %s734, %s743
          %s745 = smul.addr %s26, 4
          %s746 = sadd.s32 %s741, %s745
          %s747 = smul.addr %s746, 128
          %s748 = scalar_lea.hbm %s3, %s747
          %s750 = sshll.u32 %s737, 4
          %s751 = int_to_ptr.vmem [resolvable:$true] %s750
          %753 = dma.vmem_to_hbm [thread:$0]  %s751, 256, %s748, %s734
        $region44: #{tpu_custom_call.1} parent=31 // pred_fallthru
          _
      $region32: #{tpu_custom_call.1} parent=5 // pred_fallthru
        _
      %p754 = scmp.le.s32.totalorder 2, %s16
      // Predicated region
      $region45: #{tpu_custom_call.1} parent=5 // pred_check
        %p755 = pneg %p754
      $region46: #{tpu_custom_call.1} parent=5 // pred_check_branch
        %757 = sbr.rel (%p755) target = $region48
      $region47: #{tpu_custom_call.1} parent=5 // pred_region
        %s758 = ssub.s32 %s16, 2
        // Predicated region
        $region49: #{tpu_custom_call.1} parent=47 // pred_check
          %p759 = pneg %p137
        $region50: #{tpu_custom_call.1} parent=47 // pred_check_branch
          %761 = sbr.rel (%p759) target = $region52
        $region51: #{tpu_custom_call.1} parent=47 // pred_region
          %s762 = sand.u32 %s122, 1
          %s763 = scalar_lea.sflag [#allocation4], %s762
          %s764 = sand.u32 %s122, 1
          %s765 = smul.addr %s764, 16
          %s766 = scalar_lea.vmem [#allocation7], %s765
          %767 = dma.done %s763, 256
        $region52: #{tpu_custom_call.1} parent=47 // pred_fallthru
          _
      $region48: #{tpu_custom_call.1} parent=5 // pred_fallthru
        _
    $region6: #{tpu_custom_call.1} parent=1 // loop_footer
      %s20 = sadd.s32 1, %s16
    $region7: #{tpu_custom_call.1} parent=1 // loop_footer_branch
      %15 = sbr.rel target = $region3
    $region8: #{tpu_custom_call.1} parent=1 // loop_exit
      _
    %768 = vsyncpa [#allocation3], 1
    %s769 = scalar_lea.sflag [#allocation3], 1
    %770 = vsyncpa %s769, 1
    %771 = vsyncpa [#allocation6], 1
    %s772 = scalar_lea.sflag [#allocation6], 1
    %773 = vsyncpa %s772, 1
    %774 = vsyncpa [#allocation4], 1
    %s775 = scalar_lea.sflag [#allocation4], 1
    %776 = vsyncpa %s775, 1

</llo_original>
